<compile_context>
chip_gen: v6e
topology: v6e:2x2x1
jax: 0.10.0
libtpu: 0.0.40
codegen_flags: <defaults>
</compile_context>

<pallas_src>
import functools

import jax
import jax.numpy as jnp
from jax import lax
from jax.experimental import pallas as pl
from jax.experimental.pallas import tpu as pltpu


def _round_up(x, m):
    return ((x + m - 1) // m) * m


def _vmem_budget_bytes():
    """Usable VMEM budget with headroom: ~48 MiB on v7x (64 MiB/TC), ~96 MiB on
    v5e/v6e (128 MiB).  Falls back to the conservative 48 MiB if the hardware
    query is unavailable."""
    cap = 64 * 2**20
    try:
        info = pltpu.get_tpu_info()
        for name in ("vmem_capacity_bytes", "vmem_size_bytes", "vmem_bytes"):
            v = getattr(info, name, None)
            if v:
                cap = int(v)
                break
    except Exception:
        pass
    return int(min(cap - 16 * 2**20, (cap * 3) // 4))


def _pick_batch_tile(B, S, row_budget):
    """Largest divisor Bt of B such that (a) the grid keeps >= 2 steps whenever
    B >= 2 (pipelining + both v7x TensorCores), (b) Bt*S rows fit the VMEM-derived
    row budget and (c) the row block is sublane-aligned (Bt*S % 8 == 0).
    Falls back to Bt=1 (aligned S) or the full batch (block == full array rows,
    always a legal block shape)."""
    best = None
    max_bt = B // 2 if B >= 2 else B
    for bt in range(1, max_bt + 1):
        if B % bt:
            continue
        rows = bt * S
        if rows % 8 == 0 and rows <= row_budget:
            best = bt
    if best is not None:
        return best
    return 1 if S % 8 == 0 else B


def _splatflow_kernel(x_ref, centers_ref, params_ref, w_ref, *rest,
                      batch_tile, seq_len, apply_mask):
    # x_ref:       (T, D)    T = batch_tile * seq_len (feature dim NOT padded)
    # centers_ref: (Np8, D)  splat centers, zero-padded to a multiple of 8
    # params_ref:  (3, Np8)  rows: [|c|^2, -0.5/scale^2, sigmoid(amplitude)]
    # w_ref:       (D, D)    fused projection  Wv.T @ Wo.T
    # [mask_ref]:  (T, 1)    optional attention mask
    # out_ref:     (T, D)
    # attn_sc:     (T, Np8)  VMEM scratch
    # v_sc:        (T, D)    VMEM scratch
    if apply_mask:
        mask_ref, out_ref, attn_sc, v_sc = rest
    else:
        out_ref, attn_sc, v_sc = rest

    f32 = jnp.float32
    x = x_ref[...].astype(f32)                                        # (T, D)
    c = centers_ref[...]                                              # (Np8, D)
    c2 = params_ref[0:1, :]                                           # (1, Np8)
    nhis = params_ref[1:2, :]                                         # (1, Np8)
    amp = params_ref[2:3, :]                                          # (1, Np8)

    # ||x - c||^2 via the matmul expansion (MXU): |x|^2 + |c|^2 - 2 x.c
    xc = lax.dot_general(x, c, (((1,), (1,)), ((), ())),
                         preferred_element_type=f32)                  # (T, Np8)
    x2 = jnp.sum(x * x, axis=-1, keepdims=True)                       # (T, 1)
    dist_sq = x2 + c2 - 2.0 * xc                                      # (T, Np8)

    # Gaussian weights * amplitudes (all transcendental params precomputed outside).
    attn = jnp.exp(dist_sq * nhis) * amp                              # (T, Np8)
    sums = jnp.maximum(jnp.sum(attn, axis=-1, keepdims=True), 1e-8)   # (T, 1)
    # Exact reciprocal keeps the 1e-4 tolerance (approx=True is the EUP option).
    attn = attn * pl.reciprocal(sums, approx=False)
    attn_sc[...] = attn

    # Single tall projection over the whole slab:  v = x @ (Wv.T @ Wo.T)
    v_sc[...] = jnp.dot(x, w_ref[...], preferred_element_type=f32)    # (T, D)

    S = seq_len
    aligned = (S % 8) == 0

    def body(b, carry):
        r0 = b * S
        if aligned:
            r0 = pl.multiple_of(r0, 8)
        a_b = attn_sc[pl.ds(r0, S), :]                                # (S, Np8)
        v_b = v_sc[pl.ds(r0, S), :]                                   # (S, D)
        # splat_values = a_b.T @ v_b  (contraction over rows, no explicit .T)
        sv = lax.dot_general(a_b, v_b, (((0,), (0,)), ((), ())),
                             preferred_element_type=f32)              # (Np8, D)
        o_b = jnp.dot(a_b, sv, preferred_element_type=f32)            # (S, D)
        if apply_mask:
            o_b = o_b * mask_ref[pl.ds(r0, S), :]
        out_ref[pl.ds(r0, S), :] = o_b.astype(out_ref.dtype)
        return carry

    # fori_loop bounds live ranges (vs. static Python unroll); unroll a divisor.
    unroll = batch_tile if batch_tile <= 8 else max(
        d for d in (8, 4, 2, 1) if batch_tile % d == 0)
    lax.fori_loop(0, batch_tile, body, 0, unroll=unroll)


def splatflow_attention(x, splat_centers, splat_scales, splat_amplitudes,
                        w_value, w_output, attention_mask=None, *,
                        batch_tile=None):
    """Pallas implementation of SimplifiedSplatFlowAttention.forward.

    x:                (B, S, D) float32
    splat_centers:    (N, D)
    splat_scales:     (N,)  raw parameter
    splat_amplitudes: (N,)  raw parameter
    w_value, w_output:(D, D) PyTorch Linear weights (out = x @ W.T)
    attention_mask:   optional (B, S)
    """
    B, S, D = x.shape
    N = splat_centers.shape[0]
    Np8 = max(8, _round_up(N, 8))
    f32 = jnp.float32

    # ---- cheap one-time (XLA) parameter preprocessing: O(N*D + D*D) ----
    centers_p = jnp.pad(splat_centers.astype(f32), ((0, Np8 - N), (0, 0)))
    c2 = jnp.sum(centers_p * centers_p, axis=-1)                       # (Np8,)
    scales = jnp.clip(jnp.exp(splat_scales.astype(f32)), 0.1, 2.0)     # (N,)
    nhis = jnp.pad(-0.5 / (scales * scales), (0, Np8 - N))             # (Np8,)
    amps = jnp.pad(jax.nn.sigmoid(splat_amplitudes.astype(f32)),
                   (0, Np8 - N))                                       # padded amps = 0
    params = jnp.stack([c2, nhis, amps], axis=0)                       # (3, Np8)

    # Fused projection: (A @ Wv.T) @ Wo.T == A @ (Wv.T @ Wo.T)
    w_vo = w_value.astype(f32).T @ w_output.astype(f32).T              # (D, D)

    x_flat = x.reshape(B * S, D)                                       # no HBM padding

    # ---- tiling: derive the row budget from the chip's VMEM ----
    budget = _vmem_budget_bytes()
    row_bytes = 4 * (7 * D + 5 * Np8 + 2)        # dbl-buffered blocks + scratch + temps
    resident = 4 * (2 * Np8 * D + 16 * Np8 + 2 * D * D)
    row_budget = max(256, min(4096, (budget // 2 - resident) // row_bytes))
    Bt = batch_tile if batch_tile is not None else _pick_batch_tile(B, S, row_budget)
    assert B % Bt == 0
    T = Bt * S

    est = T * row_bytes + resident
    vmem_limit = int(min(budget, max(2 * est, 32 * 2**20)))

    apply_mask = attention_mask is not None
    args = [x_flat, centers_p, params, w_vo]
    in_specs = [
        pl.BlockSpec((T, D), lambda i: (i, 0)),        # x slab (feature dim = full D)
        pl.BlockSpec((Np8, D), lambda i: (0, 0)),      # splat centers (resident)
        pl.BlockSpec((3, Np8), lambda i: (0, 0)),      # fused per-splat params
        pl.BlockSpec((D, D), lambda i: (0, 0)),        # fused Wv.T @ Wo.T
    ]
    if apply_mask:
        args.append(attention_mask.reshape(B * S, 1).astype(f32))
        in_specs.append(pl.BlockSpec((T, 1), lambda i: (i, 0)))

    kernel = functools.partial(_splatflow_kernel, batch_tile=Bt, seq_len=S,
                               apply_mask=apply_mask)

    out_flat = pl.pallas_call(
        kernel,
        out_shape=jax.ShapeDtypeStruct((B * S, D), x.dtype),
        grid_spec=pltpu.PrefetchScalarGridSpec(
            num_scalar_prefetch=0,
            grid=(B // Bt,),
            in_specs=in_specs,
            out_specs=pl.BlockSpec((T, D), lambda i: (i, 0)),
            scratch_shapes=[pltpu.VMEM((T, Np8), f32),
                            pltpu.VMEM((T, D), f32)],
        ),
        compiler_params=pltpu.CompilerParams(
            dimension_semantics=("parallel",),
            vmem_limit_bytes=vmem_limit),
    )(*args)

    return out_flat.reshape(B, S, D)


def splatflow_attention_ref(x, splat_centers, splat_scales, splat_amplitudes,
                            w_value, w_output, attention_mask=None):
    """Pure-JAX reference (mirrors the PyTorch forward exactly)."""
    x_expanded = x[:, :, None, :]                       # (B, S, 1, D)
    centers_expanded = splat_centers[None, None, :, :]  # (1, 1, N, D)
    distances = jnp.linalg.norm(x_expanded - centers_expanded, axis=-1)  # (B,S,N)
    scales = jnp.clip(jnp.exp(splat_scales), 0.1, 2.0)
    gaussian_weights = jnp.exp(-0.5 * (distances / scales[None, None, :]) ** 2)
    amplitudes = jax.nn.sigmoid(splat_amplitudes)
    attn = gaussian_weights * amplitudes[None, None, :]
    attn_sums = jnp.maximum(jnp.sum(attn, axis=-1, keepdims=True), 1e-8)
    attn = attn / attn_sums
    values = x @ w_value.T
    splat_values = jnp.einsum('bsn,bsd->bnd', attn, values)
    output = jnp.einsum('bsn,bnd->bsd', attn, splat_values)
    output = output @ w_output.T
    if attention_mask is not None:
        output = output * attention_mask[..., None]
    return output


if __name__ == "__main__":
    B, S, D, N = 2, 8, 32, 12

    key = jax.random.PRNGKey(0)
    k_x, k_c, k_wv, k_wo = jax.random.split(key, 4)

    x = jax.random.normal(k_x, (B, S, D), dtype=jnp.float32)

    # Deterministic parameter init matching the module's __init__ shapes/scales.
    splat_centers = 0.1 * jax.random.normal(k_c, (N, D), dtype=jnp.float32)
    splat_scales = 0.5 * jnp.ones((N,), dtype=jnp.float32)
    splat_amplitudes = 0.8 * jnp.ones((N,), dtype=jnp.float32)
    bound = 1.0 / (D ** 0.5)
    w_value = jax.random.uniform(k_wv, (D, D), minval=-bound, maxval=bound,
                                 dtype=jnp.float32)
    w_output = jax.random.uniform(k_wo, (D, D), minval=-bound, maxval=bound,
                                  dtype=jnp.float32)
    attention_mask = jnp.ones((B, S), dtype=jnp.float32)

    out = splatflow_attention(x, splat_centers, splat_scales, splat_amplitudes,
                              w_value, w_output, attention_mask)
    out = jax.block_until_ready(out)

    ref = splatflow_attention_ref(x, splat_centers, splat_scales,
                                  splat_amplitudes, w_value, w_output,
                                  attention_mask)
    assert out.shape == (B, S, D)
    max_err = jnp.max(jnp.abs(out - ref))
    assert jnp.allclose(out, ref, atol=1e-4, rtol=1e-4), \
        f"max abs diff {max_err}"

    print("KERNEL_OK")
</pallas_src>

<mosaic_0001>
module attributes {stable_mosaic.version = 11 : i64} {
  func.func @_splatflow_kernel(%arg0: i32, %arg1: memref<8x32xf32, #tpu.memory_space<vmem>>, %arg2: memref<16x32xf32, #tpu.memory_space<vmem>>, %arg3: memref<3x16xf32, #tpu.memory_space<vmem>>, %arg4: memref<32x32xf32, #tpu.memory_space<vmem>>, %arg5: memref<8x1xf32, #tpu.memory_space<vmem>>, %arg6: memref<8x32xf32, #tpu.memory_space<vmem>>, %arg7: memref<8x16xf32, #tpu.memory_space<vmem>>, %arg8: memref<8x32xf32, #tpu.memory_space<vmem>>) attributes {dimension_semantics = [#tpu.dimension_semantics<parallel>], iteration_bounds = array<i64: 2>, scalar_prefetch = 0 : i64, scratch_operands = 2 : i64, tpu.core_type = #tpu.core_type<tc>, window_params = [{transform_indices = @transform_0, window_bounds = array<i64: 8, 32>}, {pipeline_mode = #tpu.pipeline_mode<synchronous>, transform_indices = @transform_1, window_bounds = array<i64: 16, 32>}, {pipeline_mode = #tpu.pipeline_mode<synchronous>, transform_indices = @transform_2, window_bounds = array<i64: 3, 16>}, {pipeline_mode = #tpu.pipeline_mode<synchronous>, transform_indices = @transform_3, window_bounds = array<i64: 32, 32>}, {transform_indices = @transform_4, window_bounds = array<i64: 8, 1>}, {transform_indices = @transform_5, window_bounds = array<i64: 8, 32>}]} {
    %c0 = arith.constant 0 : index
    %c0_0 = arith.constant 0 : index
    %0 = vector.load %arg1[%c0, %c0_0] : memref<8x32xf32, #tpu.memory_space<vmem>>, vector<8x32xf32>
    %c0_1 = arith.constant 0 : index
    %c0_2 = arith.constant 0 : index
    %1 = vector.load %arg2[%c0_1, %c0_2] : memref<16x32xf32, #tpu.memory_space<vmem>>, vector<16x32xf32>
    %c0_3 = arith.constant 0 : index
    %c0_4 = arith.constant 0 : index
    %2 = vector.load %arg3[%c0_3, %c0_4] : memref<3x16xf32, #tpu.memory_space<vmem>>, vector<1x16xf32>
    %c1 = arith.constant 1 : index
    %c0_5 = arith.constant 0 : index
    %3 = vector.load %arg3[%c1, %c0_5] : memref<3x16xf32, #tpu.memory_space<vmem>>, vector<1x16xf32>
    %c2 = arith.constant 2 : index
    %c0_6 = arith.constant 0 : index
    %4 = vector.load %arg3[%c2, %c0_6] : memref<3x16xf32, #tpu.memory_space<vmem>>, vector<1x16xf32>
    %cst = arith.constant dense<0.000000e+00> : vector<8x16xf32>
    %5 = tpu.matmul %0, %1, %cst {dimension_numbers = #tpu.dot_dimension_numbers<[1], [1], [0], [0], [0, 0, 1, 0], [], []>} : vector<8x32xf32>, vector<16x32xf32>, vector<8x16xf32> -> vector<8x16xf32>
    %6 = arith.mulf %0, %0 : vector<8x32xf32>
    %cst_7 = arith.constant dense<0.000000e+00> : vector<8xf32>
    %7 = vector.multi_reduction <add>, %6, %cst_7 [1] : vector<8x32xf32> to vector<8xf32>
    %8 = vector.shape_cast %7 : vector<8xf32> to vector<8x1xf32>
    %9 = vector.broadcast %8 : vector<8x1xf32> to vector<8x16xf32>
    %10 = vector.broadcast %2 : vector<1x16xf32> to vector<8x16xf32>
    %11 = arith.addf %9, %10 : vector<8x16xf32>
    %cst_8 = arith.constant 2.000000e+00 : f32
    %12 = vector.broadcast %cst_8 : f32 to vector<8x16xf32>
    %13 = arith.mulf %12, %5 : vector<8x16xf32>
    %14 = arith.subf %11, %13 : vector<8x16xf32>
    %15 = vector.broadcast %3 : vector<1x16xf32> to vector<8x16xf32>
    %16 = arith.mulf %14, %15 : vector<8x16xf32>
    %17 = math.exp %16 : vector<8x16xf32>
    %18 = vector.broadcast %4 : vector<1x16xf32> to vector<8x16xf32>
    %19 = arith.mulf %17, %18 : vector<8x16xf32>
    %cst_9 = arith.constant dense<0.000000e+00> : vector<8xf32>
    %20 = vector.multi_reduction <add>, %19, %cst_9 [1] : vector<8x16xf32> to vector<8xf32>
    %21 = vector.shape_cast %20 : vector<8xf32> to vector<8x1xf32>
    %cst_10 = arith.constant 9.99999993E-9 : f32
    %22 = vector.broadcast %cst_10 : f32 to vector<8x1xf32>
    %23 = arith.maximumf %21, %22 : vector<8x1xf32>
    %24 = tpu.reciprocal %23 : vector<8x1xf32> -> vector<8x1xf32>
    %25 = vector.broadcast %24 : vector<8x1xf32> to vector<8x16xf32>
    %26 = arith.mulf %19, %25 : vector<8x16xf32>
    %c0_11 = arith.constant 0 : index
    %c0_12 = arith.constant 0 : index
    %27 = vector.load %arg7[%c0_11, %c0_12] : memref<8x16xf32, #tpu.memory_space<vmem>>, vector<8x16xf32>
    tpu.vector_store %arg7[%c0_11, %c0_12], %26 {strides = array<i32>} : memref<8x16xf32, #tpu.memory_space<vmem>>, vector<8x16xf32>,
    %c0_13 = arith.constant 0 : index
    %c0_14 = arith.constant 0 : index
    %28 = vector.load %arg4[%c0_13, %c0_14] : memref<32x32xf32, #tpu.memory_space<vmem>>, vector<32x32xf32>
    %cst_15 = arith.constant dense<0.000000e+00> : vector<8x32xf32>
    %29 = tpu.matmul %0, %28, %cst_15 {dimension_numbers = #tpu.dot_dimension_numbers<[1], [0], [0], [1], [0, 0, 1, 1], [], []>} : vector<8x32xf32>, vector<32x32xf32>, vector<8x32xf32> -> vector<8x32xf32>
    %c0_16 = arith.constant 0 : index
    %c0_17 = arith.constant 0 : index
    %30 = vector.load %arg8[%c0_16, %c0_17] : memref<8x32xf32, #tpu.memory_space<vmem>>, vector<8x32xf32>
    tpu.vector_store %arg8[%c0_16, %c0_17], %29 {strides = array<i32>} : memref<8x32xf32, #tpu.memory_space<vmem>>, vector<8x32xf32>,
    %c0_i32 = arith.constant 0 : i32
    %c8_i32 = arith.constant 8 : i32
    %31 = arith.muli %c0_i32, %c8_i32 : i32
    %32 = tpu.assume_multiple %31, 8 : i32
    %33 = arith.index_cast %32 : i32 to index
    %c0_18 = arith.constant 0 : index
    %34 = vector.load %arg7[%33, %c0_18] : memref<8x16xf32, #tpu.memory_space<vmem>>, vector<8x16xf32>
    %35 = arith.index_cast %32 : i32 to index
    %c0_19 = arith.constant 0 : index
    %36 = vector.load %arg8[%35, %c0_19] : memref<8x32xf32, #tpu.memory_space<vmem>>, vector<8x32xf32>
    %cst_20 = arith.constant dense<0.000000e+00> : vector<16x32xf32>
    %37 = tpu.matmul %34, %36, %cst_20 {dimension_numbers = #tpu.dot_dimension_numbers<[0], [0], [1], [1], [0, 1, 1, 1], [], []>} : vector<8x16xf32>, vector<8x32xf32>, vector<16x32xf32> -> vector<16x32xf32>
    %cst_21 = arith.constant dense<0.000000e+00> : vector<8x32xf32>
    %38 = tpu.matmul %34, %37, %cst_21 {dimension_numbers = #tpu.dot_dimension_numbers<[1], [0], [0], [1], [0, 0, 1, 1], [], []>} : vector<8x16xf32>, vector<16x32xf32>, vector<8x32xf32> -> vector<8x32xf32>
    %39 = arith.index_cast %32 : i32 to index
    %c0_22 = arith.constant 0 : index
    %40 = vector.load %arg5[%39, %c0_22] : memref<8x1xf32, #tpu.memory_space<vmem>>, vector<8x1xf32>
    %41 = vector.broadcast %40 : vector<8x1xf32> to vector<8x32xf32>
    %42 = arith.mulf %38, %41 : vector<8x32xf32>
    %43 = arith.index_cast %32 : i32 to index
    %c0_23 = arith.constant 0 : index
    %44 = vector.load %arg6[%43, %c0_23] : memref<8x32xf32, #tpu.memory_space<vmem>>, vector<8x32xf32>
    tpu.vector_store %arg6[%43, %c0_23], %42 {strides = array<i32>} : memref<8x32xf32, #tpu.memory_space<vmem>>, vector<8x32xf32>,
    %c1_i32 = arith.constant 1 : i32
    return
  }
  func.func @transform_0(%arg0: i32) -> (i32, i32) {
    %c0_i32 = arith.constant 0 : i32
    %c0_i32_0 = arith.constant 0 : i32
    return %arg0, %c0_i32 : i32, i32
  }
  func.func @transform_1(%arg0: i32) -> (i32, i32) {
    %c0_i32 = arith.constant 0 : i32
    %c0_i32_0 = arith.constant 0 : i32
    %c0_i32_1 = arith.constant 0 : i32
    return %c0_i32, %c0_i32_0 : i32, i32
  }
  func.func @transform_2(%arg0: i32) -> (i32, i32) {
    %c0_i32 = arith.constant 0 : i32
    %c0_i32_0 = arith.constant 0 : i32
    %c0_i32_1 = arith.constant 0 : i32
    return %c0_i32, %c0_i32_0 : i32, i32
  }
  func.func @transform_3(%arg0: i32) -> (i32, i32) {
    %c0_i32 = arith.constant 0 : i32
    %c0_i32_0 = arith.constant 0 : i32
    %c0_i32_1 = arith.constant 0 : i32
    return %c0_i32, %c0_i32_0 : i32, i32
  }
  func.func @transform_4(%arg0: i32) -> (i32, i32) {
    %c0_i32 = arith.constant 0 : i32
    %c0_i32_0 = arith.constant 0 : i32
    return %arg0, %c0_i32 : i32, i32
  }
  func.func @transform_5(%arg0: i32) -> (i32, i32) {
    %c0_i32 = arith.constant 0 : i32
    %c0_i32_0 = arith.constant 0 : i32
    return %arg0, %c0_i32 : i32, i32
  }
}

</mosaic_0001>

<llo_original>
// kernel: tpu_custom_call.1
$region0: #{tpu_custom_call.1}
  #allocation0 [shape = 'u32[]', space=smem, size = 0x4, offset = 0x4, fixed_abs, tag = 'smem constant byte address 0x4 - core index']
  #allocation1 [shape = 'u32[144,128]{1,0:T(1,128)}', space=vmem, size = 0x12000, scoped, tag = 'internal scratch']
  #allocation2 [shape = 'f32[8,16]{1,0:T(8,128)}', space=vmem, size = 0x1000, scoped, tag = 'scratch operand']
  #allocation3 [shape = 'f32[8,32]{1,0:T(8,128)}', space=vmem, size = 0x1000, scoped, tag = 'scratch operand']
  %s0 = inlined_call_operand.vmem [shape: f32[16,32], index: 0, kind: input, shape index: {}]
  %s1 = inlined_call_operand.hbm [shape: f32[16,32], index: 1, kind: input, shape index: {}]
  %s2 = inlined_call_operand.vmem [shape: f32[3,16], index: 2, kind: input, shape index: {}]
  %s3 = inlined_call_operand.hbm [shape: f32[32,32], index: 3, kind: input, shape index: {}]
  %s4 = inlined_call_operand.vmem [shape: f32[16,1], index: 4, kind: input, shape index: {}]
  %s5 = inlined_call_operand.hbm [shape: f32[16,32], index: 5, kind: output, shape index: {}]
  %s6 = sld [smem:[#allocation0]]
  $region61: #{tpu_custom_call.1} parent=0
    _
  %s8 = ssub.s32 1, %s6
  %s9 = scalar_select 0, %s8, %s6
  $region1: #{tpu_custom_call.1} parent=0
    #allocation4 [shape = 'u8[8192]{0}', space=vmem, size = 0x2000, scoped, tag = 'input window, operand 1, single buffered']
    #allocation5 [shape = 's32[2]{0}', space=sflag, size = 0x8, scoped, tag = 'scoped memory for tpu_custom_call.1']
    #allocation6 [shape = 's32[2]{0}', space=sflag, size = 0x8, scoped, tag = 'scoped memory for tpu_custom_call.1']
    #allocation7 [shape = 'u8[16384]{0}', space=vmem, size = 0x4000, scoped, tag = 'input window, operand 3, single buffered']
    #allocation8 [shape = 's32[1]{0}', space=sflag, size = 0x4, scoped, tag = 'scoped memory for tpu_custom_call.1']
    #allocation9 [shape = 'u8[8192]{0}', space=vmem, size = 0x2000, scoped, tag = 'output window, operand 0']
    %10 = vsyncpa [#allocation5], 0
    %11 = vsyncpa [#allocation8], 0
    %12 = vsyncpa [#allocation6], 0
    %s13 = scalar_lea.sflag [#allocation6], 1
    %14 = vsyncpa %s13, 0
    loop: start=0, step=1, limit=4
    $region2: #{tpu_custom_call.1} parent=1 // loop_pre_header
      _
    $region3: #{tpu_custom_call.1} parent=1 // loop_header
      %s16 = sphi 0, %s20
      %p17 = scmp.ge.s32.totalorder %s16, 4
      %s26 = sphi 0, %s28
      %s29 = sphi 0, %s26
      %s30 = sphi 0, %s29
      %s46 = sphi 0, %s30
      %s50 = sphi 0, %s50
      %s52 = sphi 0, %s50
      %s53 = sphi 0, %s52
      %s67 = sphi 0, %s53
      %s71 = sphi 0, %s71
      %s73 = sphi 0, %s71
      %s74 = sphi 0, %s73
      %s88 = sphi 0, %s74
      %s92 = sphi 0, %s92
      %s94 = sphi 0, %s92
      %s95 = sphi 0, %s94
      %s109 = sphi 0, %s95
      %s115 = sphi 0, %s117
      %s118 = sphi 0, %s115
      %s119 = sphi 0, %s118
      %s135 = sphi 0, %s119
      %s141 = sphi 0, %s143
      %s144 = sphi 0, %s141
      %s145 = sphi 0, %s144
      %s161 = sphi 0, %s145
    $region4: #{tpu_custom_call.1} parent=1 // loop_header_branch
      %19 = sbr.rel (%p17) target = $region8
    $region5: #{tpu_custom_call.1} parent=1 // loop_body
      %s21 = ssub.s32 %s16, 1
      %s22 = ssub.s32 %s16, 2
      %s23 = sadd.s32 %s16, 1
      %s24 = ssub.s32 %s16, %s23
      %p25 = scmp.eq.s32.totalorder %s24, 0
      %s27 = sadd.s32 %s26, 1
      %s28 = scalar_select %p25, %s26, %s27
      %p31 = pneg %p25
      %p32 = scmp.eq.s32.totalorder %s16, 1
      %p33 = por %p31, %p32
      %p34 = scmp.ne.s32.totalorder %s26, %s29
      %p35 = scmp.eq.s32.totalorder %s16, 0
      %p36 = por %p34, %p35
      %p37 = scmp.ne.s32.totalorder %s26, %s29
      %p38 = scmp.eq.s32.totalorder %s21, 1
      %p39 = por %p37, %p38
      %p40 = scmp.ne.s32.totalorder %s29, %s30
      %p41 = scmp.eq.s32.totalorder %s21, 0
      %p42 = por %p40, %p41
      %p43 = scmp.ne.s32.totalorder %s29, %s30
      %p44 = scmp.eq.s32.totalorder %s22, 1
      %p45 = por %p43, %p44
      %p47 = scmp.ne.s32.totalorder %s30, %s46
      %p48 = scmp.eq.s32.totalorder %s22, 0
      %p49 = por %p47, %p48
      %s51 = sadd.s32 %s50, 1
      %p54 = scmp.eq.s32.totalorder %s16, 1
      %p55 = scmp.ne.s32.totalorder %s50, %s52
      %p56 = scmp.eq.s32.totalorder %s16, 0
      %p57 = por %p55, %p56
      %p58 = scmp.ne.s32.totalorder %s50, %s52
      %p59 = scmp.eq.s32.totalorder %s21, 1
      %p60 = por %p58, %p59
      %p61 = scmp.ne.s32.totalorder %s52, %s53
      %p62 = scmp.eq.s32.totalorder %s21, 0
      %p63 = por %p61, %p62
      %p64 = scmp.ne.s32.totalorder %s52, %s53
      %p65 = scmp.eq.s32.totalorder %s22, 1
      %p66 = por %p64, %p65
      %p68 = scmp.ne.s32.totalorder %s53, %s67
      %p69 = scmp.eq.s32.totalorder %s22, 0
      %p70 = por %p68, %p69
      %s72 = sadd.s32 %s71, 1
      %p75 = scmp.eq.s32.totalorder %s16, 1
      %p76 = scmp.ne.s32.totalorder %s71, %s73
      %p77 = scmp.eq.s32.totalorder %s16, 0
      %p78 = por %p76, %p77
      %p79 = scmp.ne.s32.totalorder %s71, %s73
      %p80 = scmp.eq.s32.totalorder %s21, 1
      %p81 = por %p79, %p80
      %p82 = scmp.ne.s32.totalorder %s73, %s74
      %p83 = scmp.eq.s32.totalorder %s21, 0
      %p84 = por %p82, %p83
      %p85 = scmp.ne.s32.totalorder %s73, %s74
      %p86 = scmp.eq.s32.totalorder %s22, 1
      %p87 = por %p85, %p86
      %p89 = scmp.ne.s32.totalorder %s74, %s88
      %p90 = scmp.eq.s32.totalorder %s22, 0
      %p91 = por %p89, %p90
      %s93 = sadd.s32 %s92, 1
      %p96 = scmp.eq.s32.totalorder %s16, 1
      %p97 = scmp.ne.s32.totalorder %s92, %s94
      %p98 = scmp.eq.s32.totalorder %s16, 0
      %p99 = por %p97, %p98
      %p100 = scmp.ne.s32.totalorder %s92, %s94
      %p101 = scmp.eq.s32.totalorder %s21, 1
      %p102 = por %p100, %p101
      %p103 = scmp.ne.s32.totalorder %s94, %s95
      %p104 = scmp.eq.s32.totalorder %s21, 0
      %p105 = por %p103, %p104
      %p106 = scmp.ne.s32.totalorder %s94, %s95
      %p107 = scmp.eq.s32.totalorder %s22, 1
      %p108 = por %p106, %p107
      %p110 = scmp.ne.s32.totalorder %s95, %s109
      %p111 = scmp.eq.s32.totalorder %s22, 0
      %p112 = por %p110, %p111
      %s113 = ssub.s32 %s16, %s23
      %p114 = scmp.eq.s32.totalorder %s113, 0
      %s116 = sadd.s32 %s115, 1
      %s117 = scalar_select %p114, %s115, %s116
      %p120 = pneg %p114
      %p121 = scmp.eq.s32.totalorder %s16, 1
      %p122 = por %p120, %p121
      %p123 = scmp.ne.s32.totalorder %s115, %s118
      %p124 = scmp.eq.s32.totalorder %s16, 0
      %p125 = por %p123, %p124
      %p126 = scmp.ne.s32.totalorder %s115, %s118
      %p127 = scmp.eq.s32.totalorder %s21, 1
      %p128 = por %p126, %p127
      %p129 = scmp.ne.s32.totalorder %s118, %s119
      %p130 = scmp.eq.s32.totalorder %s21, 0
      %p131 = por %p129, %p130
      %p132 = scmp.ne.s32.totalorder %s118, %s119
      %p133 = scmp.eq.s32.totalorder %s22, 1
      %p134 = por %p132, %p133
      %p136 = scmp.ne.s32.totalorder %s119, %s135
      %p137 = scmp.eq.s32.totalorder %s22, 0
      %p138 = por %p136, %p137
      %s139 = ssub.s32 %s16, %s23
      %p140 = scmp.eq.s32.totalorder %s139, 0
      %s142 = sadd.s32 %s141, 1
      %s143 = scalar_select %p140, %s141, %s142
      %p146 = pneg %p140
      %p147 = scmp.eq.s32.totalorder %s16, 1
      %p148 = por %p146, %p147
      %p149 = scmp.ne.s32.totalorder %s141, %s144
      %p150 = scmp.eq.s32.totalorder %s16, 0
      %p151 = por %p149, %p150
      %p152 = scmp.ne.s32.totalorder %s141, %s144
      %p153 = scmp.eq.s32.totalorder %s21, 1
      %p154 = por %p152, %p153
      %p155 = scmp.ne.s32.totalorder %s144, %s145
      %p156 = scmp.eq.s32.totalorder %s21, 0
      %p157 = por %p155, %p156
      %p158 = scmp.ne.s32.totalorder %s144, %s145
      %p159 = scmp.eq.s32.totalorder %s22, 1
      %p160 = por %p158, %p159
      %p162 = scmp.ne.s32.totalorder %s145, %s161
      %p163 = scmp.eq.s32.totalorder %s22, 0
      %p164 = por %p162, %p163
      %p165 = scmp.le.s32.totalorder 1, %s16
      %p166 = scmp.lt.s32.totalorder %s16, 3
      %p167 = pnand %p165, %p166
      %p168 = pneg %p167
      // Predicated region
      $region9: #{tpu_custom_call.1} parent=5 // pred_check
        _
      $region10: #{tpu_custom_call.1} parent=5 // pred_check_branch
        %170 = sbr.rel (%p167) target = $region12
      $region11: #{tpu_custom_call.1} parent=5 // pred_region
        %s171 = ssub.s32 %s16, 1
        // Predicated region
        $region13: #{tpu_custom_call.1} parent=11 // pred_check
          %p172 = pneg %p63
        $region14: #{tpu_custom_call.1} parent=11 // pred_check_branch
          %174 = sbr.rel (%p172) target = $region16
        $region15: #{tpu_custom_call.1} parent=11 // pred_region
          %s176 = ssub.s32 256, 256
          %177 = vsyncadd [#allocation5], %s176
          %s178 = sshll.u32 [#allocation4], 4
          %s179 = int_to_ptr.vmem [resolvable:$true] %s178
          %184 = dma.hbm_to_vmem [thread:$0]  %s1, 256, %s179, [#allocation5], 128, 128, 8
        $region16: #{tpu_custom_call.1} parent=11 // pred_fallthru
          _
        // Predicated region
        $region17: #{tpu_custom_call.1} parent=11 // pred_check
          %p185 = pneg %p84
        $region18: #{tpu_custom_call.1} parent=11 // pred_check_branch
          %187 = sbr.rel (%p185) target = $region20
        $region19: #{tpu_custom_call.1} parent=11 // pred_region
          _
        $region20: #{tpu_custom_call.1} parent=11 // pred_fallthru
          _
        // Predicated region
        $region21: #{tpu_custom_call.1} parent=11 // pred_check
          %p188 = pneg %p105
        $region22: #{tpu_custom_call.1} parent=11 // pred_check_branch
          %190 = sbr.rel (%p188) target = $region24
        $region23: #{tpu_custom_call.1} parent=11 // pred_region
          %s192 = ssub.s32 512, 512
          %193 = vsyncadd [#allocation8], %s192
          %s194 = sshll.u32 [#allocation7], 4
          %s195 = int_to_ptr.vmem [resolvable:$true] %s194
          %200 = dma.hbm_to_vmem [thread:$0]  %s3, 512, %s195, [#allocation8], 128, 128, 8
        $region24: #{tpu_custom_call.1} parent=11 // pred_fallthru
          _
      $region12: #{tpu_custom_call.1} parent=5 // pred_fallthru
        _
      %p201 = scmp.lt.s32.totalorder %s16, 2
      // Predicated region
      $region25: #{tpu_custom_call.1} parent=5 // pred_check
        %p202 = pneg %p201
      $region26: #{tpu_custom_call.1} parent=5 // pred_check_branch
        %204 = sbr.rel (%p202) target = $region28
      $region27: #{tpu_custom_call.1} parent=5 // pred_region
        // Predicated region
        $region29: #{tpu_custom_call.1} parent=27 // pred_check
          %p205 = pneg %p36
        $region30: #{tpu_custom_call.1} parent=27 // pred_check_branch
          %207 = sbr.rel (%p205) target = $region32
        $region31: #{tpu_custom_call.1} parent=27 // pred_region
          %p208 = scmp.lt.s32.totalorder %s16, 1
          %s209 = scalar_select %p208, %s16, 1
          %s210 = smul.addr %s209, 8
          %s211 = scalar_lea.vmem %s0, %s210
        $region32: #{tpu_custom_call.1} parent=27 // pred_fallthru
          _
        // Predicated region
        $region33: #{tpu_custom_call.1} parent=27 // pred_check
          %p212 = pneg %p125
        $region34: #{tpu_custom_call.1} parent=27 // pred_check_branch
          %214 = sbr.rel (%p212) target = $region36
        $region35: #{tpu_custom_call.1} parent=27 // pred_region
          %p215 = scmp.lt.s32.totalorder %s16, 1
          %s216 = scalar_select %p215, %s16, 1
          %s217 = smul.addr %s216, 8
          %s218 = scalar_lea.vmem %s4, %s217
        $region36: #{tpu_custom_call.1} parent=27 // pred_fallthru
          _
      $region28: #{tpu_custom_call.1} parent=5 // pred_fallthru
        _
      %p219 = scmp.le.s32.totalorder 1, %s16
      %p220 = scmp.lt.s32.totalorder %s16, 3
      %p221 = pnand %p219, %p220
      %p222 = pneg %p221
      // Predicated region
      $region37: #{tpu_custom_call.1} parent=5 // pred_check
        _
      $region38: #{tpu_custom_call.1} parent=5 // pred_check_branch
        %224 = sbr.rel (%p221) target = $region40
      $region39: #{tpu_custom_call.1} parent=5 // pred_region
        %s225 = ssub.s32 %s16, 1
        // Predicated region
        $region41: #{tpu_custom_call.1} parent=39 // pred_check
          %p226 = pneg %p63
        $region42: #{tpu_custom_call.1} parent=39 // pred_check_branch
          %228 = sbr.rel (%p226) target = $region44
        $region43: #{tpu_custom_call.1} parent=39 // pred_region
          %229 = dma.done [#allocation5], 256
        $region44: #{tpu_custom_call.1} parent=39 // pred_fallthru
          _
        // Predicated region
        $region45: #{tpu_custom_call.1} parent=39 // pred_check
          %p230 = pneg %p105
        $region46: #{tpu_custom_call.1} parent=39 // pred_check_branch
          %232 = sbr.rel (%p230) target = $region48
        $region47: #{tpu_custom_call.1} parent=39 // pred_region
          %233 = dma.done [#allocation8], 512
        $region48: #{tpu_custom_call.1} parent=39 // pred_fallthru
          _
        %p234 = scmp.lt.s32.totalorder %s21, 1
        %s235 = scalar_select %p234, %s21, 1
        %s236 = smul.addr %s235, 8
        %s237 = scalar_lea.vmem %s0, %s236
        %p238 = pneg %p42
        %p239 = pneg %p39
        %p240 = pneg %p63
        %p241 = pneg %p60
        %p242 = pneg %p84
        %p243 = pneg %p81
        %p244 = pneg %p105
        %p245 = pneg %p102
        %p246 = scmp.lt.s32.totalorder %s21, 1
        %s247 = scalar_select %p246, %s21, 1
        %s248 = smul.addr %s247, 8
        %s249 = scalar_lea.vmem %s4, %s248
        %p250 = pneg %p131
        %p251 = pneg %p128
        %p252 = pneg %p157
        %p253 = pneg %p154
        %s254 = sand.u32 %s144, 1
        %s255 = scalar_lea.sflag [#allocation6], %s254
        %s256 = sand.u32 %s144, 1
        %s257 = smul.addr %s256, 8
        %s258 = scalar_lea.vmem [#allocation9], %s257
        %p259 = scmp.lt.s32.totalorder %s21, 1
        %s260 = scalar_select %p259, %s21, 1
        %s261 = smul.addr %s260, 8
        %s262 = scalar_lea.vmem %s0, %s261
        %p263 = scmp.lt.s32.totalorder %s21, 1
        %s264 = scalar_select %p263, %s21, 1
        %s265 = smul.addr %s264, 8
        %s266 = scalar_lea.vmem %s4, %s265
        %v267 = vld [vmem:[%s262] sm:$0xff]
        %v268 = vld [vmem:[#allocation4] sm:$0xff]
        %v269 = vld [vmem:[#allocation4 + $0x8] sm:$0xff]
        %v270 = vld [vmem:[%s2] sm:$0x1]
        %v271 = vld [vmem:[%s2 + $0x1] sm:$0x1]
        %v272 = vld [vmem:[%s2 + $0x2] sm:$0x1]
        %vm273 = vcmask 261120
        %v275 = vsel %vm273, %v267, 0
        %v278 = vsel %vm273, %v268, 0
        %v281 = vsel %vm273, %v269, 0
        %283 = vmatprep.subr.mxu0 0.0
        %284 = vmatpush1.xpose.msra.mxu0 0.0
        %285 = vmatprep.subr.mxu0 0.0
        %286 = vmatpush1.xpose.msra.mxu0 0.0
        %287 = vmatprep.subr.mxu0 0.0
        %288 = vmatpush1.xpose.msra.mxu0 0.0
        %289 = vmatprep.subr.mxu0 0.0
        %290 = vmatpush1.xpose.msra.mxu0 0.0
        %291 = vmatprep.subr.mxu0 0.0
        %292 = vmatpush1.xpose.msra.mxu0 0.0
        %293 = vmatprep.subr.mxu0 0.0
        %294 = vmatpush1.xpose.msra.mxu0 0.0
        %295 = vmatprep.subr.mxu0 0.0
        %296 = vmatpush1.xpose.msra.mxu0 0.0
        %297 = vmatprep.subr.mxu0 0.0
        %298 = vmatpush1.xpose.msra.mxu0 0.0
        %299 = vmatprep.subr.mxu0 0.0
        %300 = vmatpush1.xpose.msra.mxu0 0.0
        %301 = vmatprep.subr.mxu0 0.0
        %302 = vmatpush1.xpose.msra.mxu0 0.0
        %303 = vmatprep.subr.mxu0 0.0
        %304 = vmatpush1.xpose.msra.mxu0 0.0
        %305 = vmatprep.subr.mxu0 0.0
        %306 = vmatpush1.xpose.msra.mxu0 0.0
        %307 = vmatprep.subr.mxu0 0.0
        %308 = vmatpush1.xpose.msra.mxu0 0.0
        %309 = vmatprep.subr.mxu0 0.0
        %310 = vmatpush1.xpose.msra.mxu0 0.0
        %311 = vmatprep.subr.mxu0 0.0
        %312 = vmatpush1.xpose.msra.mxu0 %v281
        %313 = vmatprep.subr.mxu0 0.0
        %314 = vmatpush1.xpose.msra.mxu0 %v278
        %315 = vmatprep.subr.mxu0 0.0
        %316 = vmatpush2.xpose.msra.mxu0 0.0
        %317 = vmatprep.subr.mxu0 0.0
        %318 = vmatpush2.xpose.msra.mxu0 0.0
        %319 = vmatprep.subr.mxu0 0.0
        %320 = vmatpush2.xpose.msra.mxu0 0.0
        %321 = vmatprep.subr.mxu0 0.0
        %322 = vmatpush2.xpose.msra.mxu0 0.0
        %323 = vmatprep.subr.mxu0 0.0
        %324 = vmatpush2.xpose.msra.mxu0 0.0
        %325 = vmatprep.subr.mxu0 0.0
        %326 = vmatpush2.xpose.msra.mxu0 0.0
        %327 = vmatprep.subr.mxu0 0.0
        %328 = vmatpush2.xpose.msra.mxu0 0.0
        %329 = vmatprep.subr.mxu0 0.0
        %330 = vmatpush2.xpose.msra.mxu0 0.0
        %331 = vmatprep.subr.mxu0 0.0
        %332 = vmatpush2.xpose.msra.mxu0 0.0
        %333 = vmatprep.subr.mxu0 0.0
        %334 = vmatpush2.xpose.msra.mxu0 0.0
        %335 = vmatprep.subr.mxu0 0.0
        %336 = vmatpush2.xpose.msra.mxu0 0.0
        %337 = vmatprep.subr.mxu0 0.0
        %338 = vmatpush2.xpose.msra.mxu0 0.0
        %339 = vmatprep.subr.mxu0 0.0
        %340 = vmatpush2.xpose.msra.mxu0 0.0
        %341 = vmatprep.subr.mxu0 0.0
        %342 = vmatpush2.xpose.msra.mxu0 0.0
        %343 = vmatprep.subr.mxu0 0.0
        %344 = vmatpush2.xpose.msra.mxu0 0.0
        %345 = vmatprep.subr.mxu0 0.0
        %346 = vmatpush2.xpose.msra.mxu0 0.0
        %347 = vmatprep.mubr.f32.mxu0 0.0
        %348 = vmatmul.mubr.f32.gmra.mxu0 %v275
        %v349 = vpop.f32.mrf.mxu0
        %v350 = vadd.f32 0.0, %v349
        %v351 = vpop.f32.mrf.mxu0
        %352 = vdwg.mxu0
        %v353 = vmul.f32 %v267, %v267
        %v354 = vsel %vm273, %v353, 0.0
        %355 = vadd.xlane.f32.xlu0 %v354
        %v356 = vpop.xlane.xlu0 %355
        %v357 = vlaneseq
        %v358 = vshrl.u32 %v357, 7
        %v359 = vsub.s32 0, %v358
        %v360 = vrot.slane %v270, %v359
        %v361 = vadd.f32 %v356, %v360
        %v362 = vmul.f32 %v350, 2.0
        %v363 = vsub.f32 %v361, %v362
        %v364 = vlaneseq
        %v365 = vshrl.u32 %v364, 7
        %v366 = vsub.s32 0, %v365
        %v367 = vrot.slane %v271, %v366
        %v368 = vmul.f32 %v363, %v367
        %v369 = vmul.f32 %v368, 1.442695
        %v370 = vpow.pop %v369
        %v371 = vlaneseq
        %v372 = vshrl.u32 %v371, 7
        %v373 = vsub.s32 0, %v372
        %v374 = vrot.slane %v272, %v373
        %v375 = vmul.f32 %v370, %v374
        %vm376 = vcmask 130048
        %v377 = vsel %vm376, %v375, 0.0
        %378 = vadd.xlane.f32.xlu0 %v377
        %v379 = vpop.xlane.xlu0 %378
        %v380 = vmax.f32 %v379, 1e-08
        %v381 = vrcp.pop %v380
        %v382 = vmul.f32 %v375, %v381
        %383 = vst.msk [vmem:[#allocation2] sm:$0xff] %vm376, %v382
        %v384 = vld [vmem:[#allocation7] sm:$0xff]
        %v385 = vld [vmem:[#allocation7 + $0x8] sm:$0xff]
        %v386 = vld [vmem:[#allocation7 + $0x10] sm:$0xff]
        %v387 = vld [vmem:[#allocation7 + $0x18] sm:$0xff]
        %388 = vmatprep.subr.mxu0 0.0
        %389 = vmatpush1.msra.mxu0 0.0
        %390 = vmatprep.subr.mxu0 0.0
        %391 = vmatpush1.msra.mxu0 0.0
        %392 = vmatprep.subr.mxu0 0.0
        %393 = vmatpush1.msra.mxu0 0.0
        %394 = vmatprep.subr.mxu0 0.0
        %395 = vmatpush1.msra.mxu0 0.0
        %396 = vmatprep.subr.mxu0 0.0
        %397 = vmatpush1.msra.mxu0 0.0
        %398 = vmatprep.subr.mxu0 0.0
        %399 = vmatpush1.msra.mxu0 0.0
        %400 = vmatprep.subr.mxu0 0.0
        %401 = vmatpush1.msra.mxu0 0.0
        %402 = vmatprep.subr.mxu0 0.0
        %403 = vmatpush1.msra.mxu0 0.0
        %404 = vmatprep.subr.mxu0 0.0
        %405 = vmatpush1.msra.mxu0 0.0
        %406 = vmatprep.subr.mxu0 0.0
        %407 = vmatpush1.msra.mxu0 0.0
        %408 = vmatprep.subr.mxu0 0.0
        %409 = vmatpush1.msra.mxu0 0.0
        %410 = vmatprep.subr.mxu0 0.0
        %411 = vmatpush1.msra.mxu0 0.0
        %412 = vmatprep.subr.mxu0 0.0
        %413 = vmatpush1.msra.mxu0 %v387
        %414 = vmatprep.subr.mxu0 0.0
        %415 = vmatpush1.msra.mxu0 %v386
        %416 = vmatprep.subr.mxu0 0.0
        %417 = vmatpush1.msra.mxu0 %v385
        %418 = vmatprep.subr.mxu0 0.0
        %419 = vmatpush1.msra.mxu0 %v384
        %420 = vmatprep.subr.mxu0 0.0
        %421 = vmatpush2.msra.mxu0 0.0
        %422 = vmatprep.subr.mxu0 0.0
        %423 = vmatpush2.msra.mxu0 0.0
        %424 = vmatprep.subr.mxu0 0.0
        %425 = vmatpush2.msra.mxu0 0.0
        %426 = vmatprep.subr.mxu0 0.0
        %427 = vmatpush2.msra.mxu0 0.0
        %428 = vmatprep.subr.mxu0 0.0
        %429 = vmatpush2.msra.mxu0 0.0
        %430 = vmatprep.subr.mxu0 0.0
        %431 = vmatpush2.msra.mxu0 0.0
        %432 = vmatprep.subr.mxu0 0.0
        %433 = vmatpush2.msra.mxu0 0.0
        %434 = vmatprep.subr.mxu0 0.0
        %435 = vmatpush2.msra.mxu0 0.0
        %436 = vmatprep.subr.mxu0 0.0
        %437 = vmatpush2.msra.mxu0 0.0
        %438 = vmatprep.subr.mxu0 0.0
        %439 = vmatpush2.msra.mxu0 0.0
        %440 = vmatprep.subr.mxu0 0.0
        %441 = vmatpush2.msra.mxu0 0.0
        %442 = vmatprep.subr.mxu0 0.0
        %443 = vmatpush2.msra.mxu0 0.0
        %444 = vmatprep.subr.mxu0 0.0
        %445 = vmatpush2.msra.mxu0 0.0
        %446 = vmatprep.subr.mxu0 0.0
        %447 = vmatpush2.msra.mxu0 0.0
        %448 = vmatprep.subr.mxu0 0.0
        %449 = vmatpush2.msra.mxu0 0.0
        %450 = vmatprep.subr.mxu0 0.0
        %451 = vmatpush2.msra.mxu0 0.0
        %452 = vmatprep.mubr.f32.mxu0 0.0
        %453 = vmatmul.mubr.f32.gmra.mxu0 %v275
        %v454 = vpop.f32.mrf.mxu0
        %v455 = vadd.f32 0.0, %v454
        %v456 = vpop.f32.mrf.mxu0
        %457 = vdwg.mxu0
        %458 = vst.msk [vmem:[#allocation3] sm:$0xff] %vm273, %v455
        %v459 = vld [vmem:[#allocation2] sm:$0xff]
        %v460 = vld [vmem:[#allocation3] sm:$0xff]
        %461 = vxpose.xlu0.b32.start [1/16] %v459, 128
        %462 = vxpose.xlu0.b32.cont [2/16] 0.0, 128
        %463 = vxpose.xlu0.b32.cont [3/16] 0.0, 128
        %464 = vxpose.xlu0.b32.cont [4/16] 0.0, 128
        %465 = vxpose.xlu0.b32.cont [5/16] 0.0, 128
        %466 = vxpose.xlu0.b32.cont [6/16] 0.0, 128
        %467 = vxpose.xlu0.b32.cont [7/16] 0.0, 128
        %468 = vxpose.xlu0.b32.cont [8/16] 0.0, 128
        %469 = vxpose.xlu0.b32.cont [9/16] 0.0, 128
        %470 = vxpose.xlu0.b32.cont [10/16] 0.0, 128
        %471 = vxpose.xlu0.b32.cont [11/16] 0.0, 128
        %472 = vxpose.xlu0.b32.cont [12/16] 0.0, 128
        %473 = vxpose.xlu0.b32.cont [13/16] 0.0, 128
        %474 = vxpose.xlu0.b32.cont [14/16] 0.0, 128
        %475 = vxpose.xlu0.b32.cont [15/16] 0.0, 128
        %476 = vxpose.xlu0.b32.end [16/16] 0.0, 128
        %v477 = vpop.trf.xlu0
        %v478 = vpop.trf.xlu0
        %v479 = vpop.trf.xlu0
        %v480 = vpop.trf.xlu0
        %v481 = vpop.trf.xlu0
        %v482 = vpop.trf.xlu0
        %v483 = vpop.trf.xlu0
        %v484 = vpop.trf.xlu0
        %v485 = vpop.trf.xlu0
        %v486 = vpop.trf.xlu0
        %v487 = vpop.trf.xlu0
        %v488 = vpop.trf.xlu0
        %v489 = vpop.trf.xlu0
        %v490 = vpop.trf.xlu0
        %v491 = vpop.trf.xlu0
        %v492 = vpop.trf.xlu0
        %vm493 = vcmask 64512
        %v495 = vsel %vm493, %v477, 0
        %v498 = vsel %vm493, %v478, 0
        %500 = vmatprep.subr.mxu0 0.0
        %501 = vmatpush1.msra.mxu0 0.0
        %502 = vmatprep.subr.mxu0 0.0
        %503 = vmatpush1.msra.mxu0 0.0
        %504 = vmatprep.subr.mxu0 0.0
        %505 = vmatpush1.msra.mxu0 0.0
        %506 = vmatprep.subr.mxu0 0.0
        %507 = vmatpush1.msra.mxu0 0.0
        %508 = vmatprep.subr.mxu0 0.0
        %509 = vmatpush1.msra.mxu0 0.0
        %510 = vmatprep.subr.mxu0 0.0
        %511 = vmatpush1.msra.mxu0 0.0
        %512 = vmatprep.subr.mxu0 0.0
        %513 = vmatpush1.msra.mxu0 0.0
        %514 = vmatprep.subr.mxu0 0.0
        %515 = vmatpush1.msra.mxu0 0.0
        %516 = vmatprep.subr.mxu0 0.0
        %517 = vmatpush1.msra.mxu0 0.0
        %518 = vmatprep.subr.mxu0 0.0
        %519 = vmatpush1.msra.mxu0 0.0
        %520 = vmatprep.subr.mxu0 0.0
        %521 = vmatpush1.msra.mxu0 0.0
        %522 = vmatprep.subr.mxu0 0.0
        %523 = vmatpush1.msra.mxu0 0.0
        %524 = vmatprep.subr.mxu0 0.0
        %525 = vmatpush1.msra.mxu0 0.0
        %526 = vmatprep.subr.mxu0 0.0
        %527 = vmatpush1.msra.mxu0 0.0
        %528 = vmatprep.subr.mxu0 0.0
        %529 = vmatpush1.msra.mxu0 0.0
        %530 = vmatprep.subr.mxu0 0.0
        %531 = vmatpush1.msra.mxu0 %v460
        %532 = vmatprep.subr.mxu0 0.0
        %533 = vmatpush2.msra.mxu0 0.0
        %534 = vmatprep.subr.mxu0 0.0
        %535 = vmatpush2.msra.mxu0 0.0
        %536 = vmatprep.subr.mxu0 0.0
        %537 = vmatpush2.msra.mxu0 0.0
        %538 = vmatprep.subr.mxu0 0.0
        %539 = vmatpush2.msra.mxu0 0.0
        %540 = vmatprep.subr.mxu0 0.0
        %541 = vmatpush2.msra.mxu0 0.0
        %542 = vmatprep.subr.mxu0 0.0
        %543 = vmatpush2.msra.mxu0 0.0
        %544 = vmatprep.subr.mxu0 0.0
        %545 = vmatpush2.msra.mxu0 0.0
        %546 = vmatprep.subr.mxu0 0.0
        %547 = vmatpush2.msra.mxu0 0.0
        %548 = vmatprep.subr.mxu0 0.0
        %549 = vmatpush2.msra.mxu0 0.0
        %550 = vmatprep.subr.mxu0 0.0
        %551 = vmatpush2.msra.mxu0 0.0
        %552 = vmatprep.subr.mxu0 0.0
        %553 = vmatpush2.msra.mxu0 0.0
        %554 = vmatprep.subr.mxu0 0.0
        %555 = vmatpush2.msra.mxu0 0.0
        %556 = vmatprep.subr.mxu0 0.0
        %557 = vmatpush2.msra.mxu0 0.0
        %558 = vmatprep.subr.mxu0 0.0
        %559 = vmatpush2.msra.mxu0 0.0
        %560 = vmatprep.subr.mxu0 0.0
        %561 = vmatpush2.msra.mxu0 0.0
        %562 = vmatprep.subr.mxu0 0.0
        %563 = vmatpush2.msra.mxu0 0.0
        %564 = vmatprep.mubr.f32.mxu0 0.0
        %565 = vmatmul.mubr.f32.gmra.mxu0 %v495
        %v566 = vpop.f32.mrf.mxu0
        %v567 = vadd.f32 0.0, %v566
        %v568 = vpop.f32.mrf.mxu0
        %569 = vmatprep.mubr.f32.mxu0 0.0
        %570 = vmatmul.mubr.f32.gmra.mxu0 %v498
        %v571 = vpop.f32.mrf.mxu0
        %v572 = vadd.f32 0.0, %v571
        %v573 = vpop.f32.mrf.mxu0
        %574 = vdwg.mxu0
        %v576 = vsel %vm376, %v459, 0
        %578 = vmatprep.subr.mxu0 0.0
        %579 = vmatpush1.msra.mxu0 0.0
        %580 = vmatprep.subr.mxu0 0.0
        %581 = vmatpush1.msra.mxu0 0.0
        %582 = vmatprep.subr.mxu0 0.0
        %583 = vmatpush1.msra.mxu0 0.0
        %584 = vmatprep.subr.mxu0 0.0
        %585 = vmatpush1.msra.mxu0 0.0
        %586 = vmatprep.subr.mxu0 0.0
        %587 = vmatpush1.msra.mxu0 0.0
        %588 = vmatprep.subr.mxu0 0.0
        %589 = vmatpush1.msra.mxu0 0.0
        %590 = vmatprep.subr.mxu0 0.0
        %591 = vmatpush1.msra.mxu0 0.0
        %592 = vmatprep.subr.mxu0 0.0
        %593 = vmatpush1.msra.mxu0 0.0
        %594 = vmatprep.subr.mxu0 0.0
        %595 = vmatpush1.msra.mxu0 0.0
        %596 = vmatprep.subr.mxu0 0.0
        %597 = vmatpush1.msra.mxu0 0.0
        %598 = vmatprep.subr.mxu0 0.0
        %599 = vmatpush1.msra.mxu0 0.0
        %600 = vmatprep.subr.mxu0 0.0
        %601 = vmatpush1.msra.mxu0 0.0
        %602 = vmatprep.subr.mxu0 0.0
        %603 = vmatpush1.msra.mxu0 0.0
        %604 = vmatprep.subr.mxu0 0.0
        %605 = vmatpush1.msra.mxu0 0.0
        %606 = vmatprep.subr.mxu0 0.0
        %607 = vmatpush1.msra.mxu0 %v572
        %608 = vmatprep.subr.mxu0 0.0
        %609 = vmatpush1.msra.mxu0 %v567
        %610 = vmatprep.subr.mxu0 0.0
        %611 = vmatpush2.msra.mxu0 0.0
        %612 = vmatprep.subr.mxu0 0.0
        %613 = vmatpush2.msra.mxu0 0.0
        %614 = vmatprep.subr.mxu0 0.0
        %615 = vmatpush2.msra.mxu0 0.0
        %616 = vmatprep.subr.mxu0 0.0
        %617 = vmatpush2.msra.mxu0 0.0
        %618 = vmatprep.subr.mxu0 0.0
        %619 = vmatpush2.msra.mxu0 0.0
        %620 = vmatprep.subr.mxu0 0.0
        %621 = vmatpush2.msra.mxu0 0.0
        %622 = vmatprep.subr.mxu0 0.0
        %623 = vmatpush2.msra.mxu0 0.0
        %624 = vmatprep.subr.mxu0 0.0
        %625 = vmatpush2.msra.mxu0 0.0
        %626 = vmatprep.subr.mxu0 0.0
        %627 = vmatpush2.msra.mxu0 0.0
        %628 = vmatprep.subr.mxu0 0.0
        %629 = vmatpush2.msra.mxu0 0.0
        %630 = vmatprep.subr.mxu0 0.0
        %631 = vmatpush2.msra.mxu0 0.0
        %632 = vmatprep.subr.mxu0 0.0
        %633 = vmatpush2.msra.mxu0 0.0
        %634 = vmatprep.subr.mxu0 0.0
        %635 = vmatpush2.msra.mxu0 0.0
        %636 = vmatprep.subr.mxu0 0.0
        %637 = vmatpush2.msra.mxu0 0.0
        %638 = vmatprep.subr.mxu0 0.0
        %639 = vmatpush2.msra.mxu0 0.0
        %640 = vmatprep.subr.mxu0 0.0
        %641 = vmatpush2.msra.mxu0 0.0
        %642 = vmatprep.mubr.f32.mxu0 0.0
        %643 = vmatmul.mubr.f32.gmra.mxu0 %v576
        %v644 = vpop.f32.mrf.mxu0
        %v645 = vadd.f32 0.0, %v644
        %v646 = vpop.f32.mrf.mxu0
        %647 = vdwg.mxu0
        %v648 = vld [vmem:[%s266] sm:$0xff]
        %650 = vset.pattern.permute.xlu0 0
        %651 = vperm.xlu0 %650, %v648
        %v652 = vpop.permute.xlu0 %651
        %v654 = vmul.f32 %v645, %v652
        %655 = vst.msk [vmem:[%s258] sm:$0xff] %vm273, %v654
        %s656 = sand.u32 %s144, 1
        %s657 = scalar_lea.sflag [#allocation6], %s656
        %s658 = sand.u32 %s144, 1
        %s659 = smul.addr %s658, 8
        %s660 = scalar_lea.vmem [#allocation9], %s659
        // Predicated region
        $region49: #{tpu_custom_call.1} parent=39 // pred_check
          %p661 = pneg %p154
        $region50: #{tpu_custom_call.1} parent=39 // pred_check_branch
          %663 = sbr.rel (%p661) target = $region52
        $region51: #{tpu_custom_call.1} parent=39 // pred_region
          %s665 = ssub.s32 128, 128
          %666 = vsyncadd %s657, %s665
          %s667 = smul.addr %s21, 128
          %s668 = scalar_lea.hbm %s5, %s667
          %s670 = sshll.u32 %s660, 4
          %s671 = int_to_ptr.vmem [resolvable:$true] %s670
          %673 = dma.vmem_to_hbm [thread:$0]  %s671, 128, %s668, %s657
        $region52: #{tpu_custom_call.1} parent=39 // pred_fallthru
          _
      $region40: #{tpu_custom_call.1} parent=5 // pred_fallthru
        _
      %p674 = scmp.le.s32.totalorder 2, %s16
      // Predicated region
      $region53: #{tpu_custom_call.1} parent=5 // pred_check
        %p675 = pneg %p674
      $region54: #{tpu_custom_call.1} parent=5 // pred_check_branch
        %677 = sbr.rel (%p675) target = $region56
      $region55: #{tpu_custom_call.1} parent=5 // pred_region
        %s678 = ssub.s32 %s16, 2
        // Predicated region
        $region57: #{tpu_custom_call.1} parent=55 // pred_check
          %p679 = pneg %p160
        $region58: #{tpu_custom_call.1} parent=55 // pred_check_branch
          %681 = sbr.rel (%p679) target = $region60
        $region59: #{tpu_custom_call.1} parent=55 // pred_region
          %s682 = sand.u32 %s145, 1
          %s683 = scalar_lea.sflag [#allocation6], %s682
          %s684 = sand.u32 %s145, 1
          %s685 = smul.addr %s684, 8
          %s686 = scalar_lea.vmem [#allocation9], %s685
          %687 = dma.done %s683, 128
        $region60: #{tpu_custom_call.1} parent=55 // pred_fallthru
          _
      $region56: #{tpu_custom_call.1} parent=5 // pred_fallthru
        _
    $region6: #{tpu_custom_call.1} parent=1 // loop_footer
      %s20 = sadd.s32 1, %s16
    $region7: #{tpu_custom_call.1} parent=1 // loop_footer_branch
      %15 = sbr.rel target = $region3
    $region8: #{tpu_custom_call.1} parent=1 // loop_exit
      _
    %688 = vsyncpa [#allocation5], 1
    %s689 = scalar_lea.sflag [#allocation5], 1
    %690 = vsyncpa %s689, 1
    %691 = vsyncpa [#allocation8], 1
    %692 = vsyncpa [#allocation6], 1
    %s693 = scalar_lea.sflag [#allocation6], 1
    %694 = vsyncpa %s693, 1

</llo_original>
